<compile_context>
chip_gen: v6e
topology: v6e:2x2x1
jax: 0.10.0
libtpu: 0.0.40
codegen_flags: <defaults>
</compile_context>

<pallas_src>
import functools

import jax
import jax.numpy as jnp
from jax import lax
from jax.experimental import pallas as pl
from jax.experimental.pallas import tpu as pltpu


# ----------------------------------------------------------------------------
# Small host-side helpers
# ----------------------------------------------------------------------------
def _cdiv(a, b):
    return (a + b - 1) // b


def _round_up(x, m):
    return _cdiv(x, m) * m


def _next_pow2(x):
    return 1 if x <= 1 else 1 << (x - 1).bit_length()


def _detect_vmem_bytes():
    """Per-TensorCore VMEM capacity; conservative 64 MiB fallback (v7x-safe)."""
    try:
        info = pltpu.get_tpu_info()
        for attr in ("vmem_capacity_bytes", "vmem_bytes", "vmem_size_bytes"):
            v = getattr(info, attr, None)
            if isinstance(v, int) and v > 0:
                return int(v)
    except Exception:
        pass
    return 64 * 1024 * 1024


def _detect_num_tensorcores():
    """1 on single-TC chips (v5e/v6e), 2 on v7x when detectable."""
    try:
        info = pltpu.get_tpu_info()
        for attr in ("num_cores", "core_count", "num_tensorcores"):
            v = getattr(info, attr, None)
            if isinstance(v, int) and v > 0:
                return min(int(v), 2)
    except Exception:
        pass
    try:
        v = getattr(jax.devices()[0], "num_cores", None)
        if isinstance(v, int) and v > 0:
            return min(int(v), 2)
    except Exception:
        pass
    return 1


# ----------------------------------------------------------------------------
# Kernel: accumulate p += i_tile^T @ j_tile into the resident output block
# ----------------------------------------------------------------------------
def _iic_pij_kernel(i_ref, j_ref, p_ref, *, tb, lanes, rows_in_array, nb):
    c = pl.program_id(0)
    b = pl.program_id(1)

    @pl.when(b == 0)
    def _():
        p_ref[...] = jnp.zeros_like(p_ref)

    row0 = (c * nb + b) * tb  # first (reshaped) batch row this block covers

    def accum(i_blk, j_blk):
        # Contract over dim 0 of both operands == i^T @ j on the MXU
        # (transposed-LHS mode), f32 accumulation.
        p_ref[...] += lax.dot_general(
            i_blk, j_blk,
            dimension_numbers=(((0,), (0,)), ((), ())),
            preferred_element_type=jnp.float32,
        )

    # Interior blocks: no masking, just the MXU contraction.
    @pl.when(row0 + tb <= rows_in_array)
    def _():
        accum(i_ref[...], j_ref[...])

    # Edge / clamped-duplicate blocks: zero rows beyond the real array so the
    # unspecified overhang (and re-read duplicate blocks) contribute nothing.
    @pl.when(row0 + tb > rows_in_array)
    def _():
        ridx = lax.broadcasted_iota(jnp.int32, (tb, lanes), 0) + row0
        mask = ridx < rows_in_array
        zero = jnp.zeros((), dtype=i_ref.dtype)
        accum(jnp.where(mask, i_ref[...], zero),
              jnp.where(mask, j_ref[...], zero))


# ----------------------------------------------------------------------------
# Tiny (k, k) epilogue in plain JAX
# ----------------------------------------------------------------------------
def _finalize(partials, alpha, k, kp, r):
    EPS = float(jnp.finfo(jnp.float32).eps)
    acc = jnp.sum(partials, axis=0)                 # combine per-core partials
    blocks = acc.reshape(r, kp, r, kp)
    # Only the r diagonal (kp, kp) blocks of the lane-densified accumulator
    # correspond to same-batch-row products; the rest is cross-row junk.
    p_ij = blocks[0, :, 0, :]
    for a in range(1, r):
        p_ij = p_ij + blocks[a, :, a, :]
    p_ij = p_ij[:k, :k]                             # drop zero-padded columns
    p_ij = (p_ij + p_ij.T) * 0.5                    # exactly symmetric
    p_ij = p_ij / jnp.sum(p_ij)                     # normalize to joint dist
    p_ij = jnp.maximum(p_ij, EPS)                   # clamp (as in PyTorch)
    # Row sums == column sums (symmetric): one marginal, one log.
    p_m = jnp.sum(p_ij, axis=0)
    log_m = jnp.log(p_m)
    loss = p_ij * (alpha * log_m[:, None]
                   + alpha * log_m[None, :]
                   - jnp.log(p_ij))
    return jnp.sum(loss)


# ----------------------------------------------------------------------------
# Wrapper
# ----------------------------------------------------------------------------
def iic_loss(i, j, alpha, *, num_cores=None, cast_bf16=True, max_block_rows=None):
    """Pallas implementation of IICLoss.forward(i, j)."""
    assert i.ndim == 2 and i.shape == j.shape
    bs, k = i.shape
    alpha = float(alpha)

    compute_dtype = jnp.bfloat16 if cast_bf16 else jnp.float32
    itemsize = jnp.dtype(compute_dtype).itemsize
    sublane = 16 if compute_dtype == jnp.bfloat16 else 8

    if num_cores is None:
        num_cores = _detect_num_tensorcores()
    num_cores = max(1, int(num_cores))

    # ---- lane-densify: fold r = 128 // kp consecutive batch rows into one
    #      128-lane row.  Zero-padded columns/rows are mathematically exact.
    if k >= 128:
        kp, r = _round_up(k, 128), 1
    else:
        kp = _next_pow2(k)
        r = 128 // kp
    lanes = kp * r

    # Cast + column-pad + reshape: fuses into (at most) one pass when the whole
    # wrapper is jitted with the producer of i/j (see __main__); when the
    # inputs are already bf16, batch % r == 0 and k | 128 it is a free view.
    def _prep(x):
        x = x.astype(compute_dtype)
        if kp != k:
            x = jnp.pad(x, ((0, 0), (0, kp - k)))
        if r > 1:
            bs1 = _round_up(bs, r)
            if bs1 != bs:
                x = jnp.pad(x, ((0, bs1 - bs), (0, 0)))
            x = x.reshape(bs1 // r, lanes)
        rows0 = x.shape[0]
        rows_p = _round_up(rows0, sublane)
        if rows_p != rows0:
            x = jnp.pad(x, ((0, rows_p - rows0), (0, 0)))
        return x

    i_p = _prep(i)
    j_p = _prep(j)
    rows = i_p.shape[0]                # reshaped, sublane-aligned row count

    # ---- tile sizing from the generation's VMEM capacity (64 MiB on v7x,
    #      128 MiB on v5e/v6e): 2 inputs x 2 pipeline buffers <= ~55% of VMEM.
    vmem_cap = _detect_vmem_bytes()
    input_budget = int(vmem_cap * 0.55)
    tb_budget = (input_budget // (2 * 2 * lanes * itemsize)) // sublane * sublane
    tb_budget = max(sublane, tb_budget)
    if max_block_rows is not None:     # override (used for testing)
        tb_budget = max(sublane, (int(max_block_rows) // sublane) * sublane)

    rows_per_core = _cdiv(rows, num_cores)
    tb = int(min(tb_budget, _round_up(rows_per_core, sublane)))
    nb = int(_cdiv(rows, num_cores * tb))     # reduction steps per core
    n_blocks = int(_cdiv(rows, tb))           # valid block indices: 0..n_blocks-1

    vmem_needed = 2 * 2 * tb * lanes * itemsize + 2 * lanes * lanes * 4
    vmem_limit = int(min(vmem_cap, max(vmem_needed + (8 << 20), 16 << 20)))

    def in_map(c, b):
        # Clamp fully-out-of-range block indices (possible when rows doesn't
        # split evenly over cores); the kernel masks those blocks to zero.
        return (jnp.minimum(c * nb + b, n_blocks - 1), 0)

    kernel = functools.partial(_iic_pij_kernel,
                               tb=tb, lanes=lanes, rows_in_array=rows, nb=nb)

    partials = pl.pallas_call(
        kernel,
        out_shape=jax.ShapeDtypeStruct((num_cores, lanes, lanes), jnp.float32),
        grid_spec=pltpu.PrefetchScalarGridSpec(
            num_scalar_prefetch=0,
            grid=(num_cores, nb),
            in_specs=[
                pl.BlockSpec((tb, lanes), in_map),
                pl.BlockSpec((tb, lanes), in_map),
            ],
            out_specs=pl.BlockSpec((None, lanes, lanes), lambda c, b: (c, 0, 0)),
        ),
        compiler_params=pltpu.CompilerParams(
            # TODO(synk): on v7x verify "parallel" actually shards axis 0 across
            # both TensorCores (else switch axis 0 to pltpu.CORE_PARALLEL).
            dimension_semantics=("parallel", "arbitrary"),
            vmem_limit_bytes=vmem_limit,
        ),
        cost_estimate=pl.CostEstimate(
            flops=2 * num_cores * nb * tb * lanes * lanes,
            transcendentals=0,
            bytes_accessed=2 * rows * lanes * itemsize
                           + num_cores * lanes * lanes * 4,
        ),
    )(i_p, j_p)

    return _finalize(partials, alpha, k, kp, r)


# ----------------------------------------------------------------------------
# Pure-JAX reference mirroring the PyTorch module exactly (f32)
# ----------------------------------------------------------------------------
def iic_loss_ref(i, j, alpha):
    EPS = float(jnp.finfo(jnp.float32).eps)
    p_ij = jnp.einsum("bk,bl->kl", i, j, precision=lax.Precision.HIGHEST)
    p_ij = (p_ij + p_ij.T) / 2.0
    p_ij = p_ij / jnp.sum(p_ij)
    p_ij = jnp.maximum(p_ij, EPS)
    k = p_ij.shape[0]
    p_i = jnp.broadcast_to(jnp.sum(p_ij, axis=0).reshape(1, k), (k, k))
    p_j = jnp.broadcast_to(jnp.sum(p_ij, axis=1).reshape(k, 1), (k, k))
    loss = p_ij * (alpha * jnp.log(p_j) + alpha * jnp.log(p_i) - jnp.log(p_ij))
    return jnp.sum(loss)


if __name__ == "__main__":
    alpha = 1.0
    base_key = jax.random.PRNGKey(0)

    def run_case(bs, k, **kw):
        ki, kj = jax.random.split(jax.random.fold_in(base_key, bs * 1000 + k))
        # Soft cluster assignments (softmax rows), as IIC expects.
        i = jax.nn.softmax(jax.random.normal(ki, (bs, k), jnp.float32), axis=-1)
        j = jax.nn.softmax(jax.random.normal(kj, (bs, k), jnp.float32), axis=-1)
        ref = jax.block_until_ready(iic_loss_ref(i, j, alpha))
        # jit the wrapper so the cast/pad/reshape prologue fuses into one pass.
        fn = jax.jit(functools.partial(iic_loss, alpha=alpha, **kw))
        out = jax.block_until_ready(fn(i, j))
        return out, ref

    # 1) Tiny shape: f32 parity (tight) and default bf16 HBM path (relaxed).
    o, r = run_case(8, 16, cast_bf16=False)
    assert jnp.allclose(o, r, rtol=2e-3, atol=1e-4), (o, r)
    o, r = run_case(8, 16, cast_bf16=True)
    assert jnp.allclose(o, r, rtol=2e-2, atol=2e-3), (o, r)

    # 2) k not a divisor of 128 + forced 2-way core split: exercises the
    #    column zero-pad and the clamped (fully masked) duplicate block.
    o, r = run_case(40, 10, cast_bf16=False, num_cores=2)
    assert jnp.allclose(o, r, rtol=2e-3, atol=1e-4), (o, r)

    # 3) Multi-step reduction with a ragged tail: exercises the in-kernel
    #    masking of the partial edge block (small tile forced for the test).
    o, r = run_case(1000, 16, cast_bf16=False, max_block_rows=48)
    assert jnp.allclose(o, r, rtol=2e-3, atol=1e-4), (o, r)

    print("KERNEL_OK")
</pallas_src>

<mosaic_0001>
module attributes {stable_mosaic.version = 11 : i64} {
  func.func @_iic_pij_kernel(%arg0: i32, %arg1: i32, %arg2: memref<8x128xf32, #tpu.memory_space<vmem>>, %arg3: memref<8x128xf32, #tpu.memory_space<vmem>>, %arg4: memref<1x128x128xf32, #tpu.memory_space<vmem>>) attributes {dimension_semantics = [#tpu.dimension_semantics<parallel>, #tpu.dimension_semantics<arbitrary>], iteration_bounds = array<i64: 1, 1>, scalar_prefetch = 0 : i64, scratch_operands = 0 : i64, tpu.core_type = #tpu.core_type<tc>, window_params = [{transform_indices = @transform_0, window_bounds = array<i64: 8, 128>}, {transform_indices = @transform_1, window_bounds = array<i64: 8, 128>}, {transform_indices = @transform_2, window_bounds = array<i64: 1, 128, 128>}]} {
    %c0_i32 = arith.constant 0 : i32
    %0 = arith.cmpi eq, %arg1, %c0_i32 : i32
    %1 = arith.extui %0 : i1 to i32
    %c0_i32_0 = arith.constant 0 : i32
    %2 = arith.cmpi ne, %1, %c0_i32_0 : i32
    scf.if %2 {
      %cst = arith.constant 0.000000e+00 : f32
      %14 = vector.broadcast %cst : f32 to vector<128x128xf32>
      %c0 = arith.constant 0 : index
      %c0_7 = arith.constant 0 : index
      %c0_8 = arith.constant 0 : index
      %15 = vector.load %arg4[%c0, %c0_7, %c0_8] : memref<1x128x128xf32, #tpu.memory_space<vmem>>, vector<1x128x128xf32>
      %16 = vector.shape_cast %15 : vector<1x128x128xf32> to vector<128x128xf32>
      %17 = vector.shape_cast %14 : vector<128x128xf32> to vector<1x128x128xf32>
      tpu.vector_store %arg4[%c0, %c0_7, %c0_8], %17 {strides = array<i32>} : memref<1x128x128xf32, #tpu.memory_space<vmem>>, vector<1x128x128xf32>,
    } else {
    }
    %c1_i32 = arith.constant 1 : i32
    %3 = arith.muli %arg0, %c1_i32 : i32
    %4 = arith.addi %3, %arg1 : i32
    %c8_i32 = arith.constant 8 : i32
    %5 = arith.muli %4, %c8_i32 : i32
    %c8_i32_1 = arith.constant 8 : i32
    %6 = arith.addi %5, %c8_i32_1 : i32
    %c8_i32_2 = arith.constant 8 : i32
    %7 = arith.cmpi sle, %6, %c8_i32_2 : i32
    %8 = arith.extui %7 : i1 to i32
    %c0_i32_3 = arith.constant 0 : i32
    %9 = arith.cmpi ne, %8, %c0_i32_3 : i32
    scf.if %9 {
      %c0 = arith.constant 0 : index
      %c0_7 = arith.constant 0 : index
      %14 = vector.load %arg2[%c0, %c0_7] : memref<8x128xf32, #tpu.memory_space<vmem>>, vector<8x128xf32>
      %c0_8 = arith.constant 0 : index
      %c0_9 = arith.constant 0 : index
      %15 = vector.load %arg3[%c0_8, %c0_9] : memref<8x128xf32, #tpu.memory_space<vmem>>, vector<8x128xf32>
      %c0_10 = arith.constant 0 : index
      %c0_11 = arith.constant 0 : index
      %c0_12 = arith.constant 0 : index
      %16 = vector.load %arg4[%c0_10, %c0_11, %c0_12] : memref<1x128x128xf32, #tpu.memory_space<vmem>>, vector<1x128x128xf32>
      %17 = vector.shape_cast %16 : vector<1x128x128xf32> to vector<128x128xf32>
      %cst = arith.constant dense<0.000000e+00> : vector<128x128xf32>
      %18 = tpu.matmul %14, %15, %cst {dimension_numbers = #tpu.dot_dimension_numbers<[0], [0], [1], [1], [0, 1, 1, 1], [], []>} : vector<8x128xf32>, vector<8x128xf32>, vector<128x128xf32> -> vector<128x128xf32>
      %19 = arith.addf %17, %18 : vector<128x128xf32>
      %c0_13 = arith.constant 0 : index
      %c0_14 = arith.constant 0 : index
      %c0_15 = arith.constant 0 : index
      %20 = vector.load %arg4[%c0_13, %c0_14, %c0_15] : memref<1x128x128xf32, #tpu.memory_space<vmem>>, vector<1x128x128xf32>
      %21 = vector.shape_cast %20 : vector<1x128x128xf32> to vector<128x128xf32>
      %22 = vector.shape_cast %19 : vector<128x128xf32> to vector<1x128x128xf32>
      tpu.vector_store %arg4[%c0_13, %c0_14, %c0_15], %22 {strides = array<i32>} : memref<1x128x128xf32, #tpu.memory_space<vmem>>, vector<1x128x128xf32>,
    } else {
    }
    %c8_i32_4 = arith.constant 8 : i32
    %10 = arith.addi %5, %c8_i32_4 : i32
    %c8_i32_5 = arith.constant 8 : i32
    %11 = arith.cmpi sgt, %10, %c8_i32_5 : i32
    %12 = arith.extui %11 : i1 to i32
    %c0_i32_6 = arith.constant 0 : i32
    %13 = arith.cmpi ne, %12, %c0_i32_6 : i32
    scf.if %13 {
      %14 = tpu.iota {dimensions = array<i32: 0>} : vector<8x128xi32>
      %15 = vector.broadcast %5 : i32 to vector<8x128xi32>
      %16 = arith.addi %14, %15 : vector<8x128xi32>
      %c8_i32_7 = arith.constant 8 : i32
      %17 = vector.broadcast %c8_i32_7 : i32 to vector<8x128xi32>
      %18 = arith.cmpi slt, %16, %17 : vector<8x128xi32>
      %c0 = arith.constant 0 : index
      %c0_8 = arith.constant 0 : index
      %19 = vector.load %arg2[%c0, %c0_8] : memref<8x128xf32, #tpu.memory_space<vmem>>, vector<8x128xf32>
      %cst = arith.constant 0.000000e+00 : f32
      %20 = vector.broadcast %cst : f32 to vector<8x128xf32>
      %21 = arith.select %18, %19, %20 : vector<8x128xi1>, vector<8x128xf32>
      %c0_9 = arith.constant 0 : index
      %c0_10 = arith.constant 0 : index
      %22 = vector.load %arg3[%c0_9, %c0_10] : memref<8x128xf32, #tpu.memory_space<vmem>>, vector<8x128xf32>
      %cst_11 = arith.constant 0.000000e+00 : f32
      %23 = vector.broadcast %cst_11 : f32 to vector<8x128xf32>
      %24 = arith.select %18, %22, %23 : vector<8x128xi1>, vector<8x128xf32>
      %c0_12 = arith.constant 0 : index
      %c0_13 = arith.constant 0 : index
      %c0_14 = arith.constant 0 : index
      %25 = vector.load %arg4[%c0_12, %c0_13, %c0_14] : memref<1x128x128xf32, #tpu.memory_space<vmem>>, vector<1x128x128xf32>
      %26 = vector.shape_cast %25 : vector<1x128x128xf32> to vector<128x128xf32>
      %cst_15 = arith.constant dense<0.000000e+00> : vector<128x128xf32>
      %27 = tpu.matmul %21, %24, %cst_15 {dimension_numbers = #tpu.dot_dimension_numbers<[0], [0], [1], [1], [0, 1, 1, 1], [], []>} : vector<8x128xf32>, vector<8x128xf32>, vector<128x128xf32> -> vector<128x128xf32>
      %28 = arith.addf %26, %27 : vector<128x128xf32>
      %c0_16 = arith.constant 0 : index
      %c0_17 = arith.constant 0 : index
      %c0_18 = arith.constant 0 : index
      %29 = vector.load %arg4[%c0_16, %c0_17, %c0_18] : memref<1x128x128xf32, #tpu.memory_space<vmem>>, vector<1x128x128xf32>
      %30 = vector.shape_cast %29 : vector<1x128x128xf32> to vector<128x128xf32>
      %31 = vector.shape_cast %28 : vector<128x128xf32> to vector<1x128x128xf32>
      tpu.vector_store %arg4[%c0_16, %c0_17, %c0_18], %31 {strides = array<i32>} : memref<1x128x128xf32, #tpu.memory_space<vmem>>, vector<1x128x128xf32>,
    } else {
    }
    return
  }
  func.func @transform_0(%arg0: i32, %arg1: i32) -> (i32, i32) {
    %c1_i32 = arith.constant 1 : i32
    %0 = arith.muli %arg0, %c1_i32 : i32
    %1 = arith.addi %0, %arg1 : i32
    %c0_i32 = arith.constant 0 : i32
    %2 = arith.minsi %1, %c0_i32 : i32
    %c0_i32_0 = arith.constant 0 : i32
    %c0_i32_1 = arith.constant 0 : i32
    return %2, %c0_i32_0 : i32, i32
  }
  func.func @transform_1(%arg0: i32, %arg1: i32) -> (i32, i32) {
    %c1_i32 = arith.constant 1 : i32
    %0 = arith.muli %arg0, %c1_i32 : i32
    %1 = arith.addi %0, %arg1 : i32
    %c0_i32 = arith.constant 0 : i32
    %2 = arith.minsi %1, %c0_i32 : i32
    %c0_i32_0 = arith.constant 0 : i32
    %c0_i32_1 = arith.constant 0 : i32
    return %2, %c0_i32_0 : i32, i32
  }
  func.func @transform_2(%arg0: i32, %arg1: i32) -> (i32, i32, i32) {
    %c0_i32 = arith.constant 0 : i32
    %c0_i32_0 = arith.constant 0 : i32
    %c0_i32_1 = arith.constant 0 : i32
    return %arg0, %c0_i32, %c0_i32_0 : i32, i32, i32
  }
}

</mosaic_0001>

<llo_original>
// kernel: iic_loss.1
$region0: #{iic_loss.1}
  #allocation0 [shape = 'u32[]', space=smem, size = 0x4, offset = 0x4, fixed_abs, tag = 'smem constant byte address 0x4 - core index']
  #allocation1 [shape = 'u32[144,128]{1,0:T(1,128)}', space=vmem, size = 0x12000, scoped, tag = 'internal scratch']
  %s0 = inlined_call_operand.vmem [shape: f32[8,128], index: 0, kind: input, shape index: {}]
  %s1 = inlined_call_operand.vmem [shape: f32[8,128], index: 1, kind: input, shape index: {}]
  %s2 = inlined_call_operand.vmem [shape: f32[1,128,128], index: 2, kind: output, shape index: {}]
  %s3 = sld [smem:[#allocation0]]
  $region30: #{iic_loss.1} parent=0
    _
  %s5 = ssub.s32 1, %s3
  %s6 = scalar_select 0, %s5, %s3
  // Predicated region
  $region2: #{iic_loss.1} parent=0 // pred_check
    _
  $region3: #{iic_loss.1} parent=0 // pred_check_branch
    %8 = sbr.rel (0) target = $region5
  $region4: #{iic_loss.1} parent=0 // pred_region
    %s9 = sadd.s32 0, 0
    %p10 = scmp.lt.s32.totalorder %s9, 0
    %s11 = scalar_select %p10, %s9, 0
    %p12 = scmp.lt.s32.totalorder %s11, 0
    %s13 = scalar_select %p12, %s11, 0
    %s14 = smul.addr %s13, 8
    %s15 = scalar_lea.vmem %s0, %s14
    %s16 = sadd.s32 0, 0
    %p17 = scmp.lt.s32.totalorder %s16, 0
    %s18 = scalar_select %p17, %s16, 0
  $region5: #{iic_loss.1} parent=0 // pred_fallthru
    _
  // Predicated region
  $region6: #{iic_loss.1} parent=0 // pred_check
    _
  $region7: #{iic_loss.1} parent=0 // pred_check_branch
    %20 = sbr.rel (0) target = $region9
  $region8: #{iic_loss.1} parent=0 // pred_region
    %s21 = sadd.s32 0, 0
    %p22 = scmp.lt.s32.totalorder %s21, 0
    %s23 = scalar_select %p22, %s21, 0
    %p24 = scmp.lt.s32.totalorder %s23, 0
    %s25 = scalar_select %p24, %s23, 0
    %s26 = smul.addr %s25, 8
    %s27 = scalar_lea.vmem %s1, %s26
    %s28 = sadd.s32 0, 0
    %p29 = scmp.lt.s32.totalorder %s28, 0
    %s30 = scalar_select %p29, %s28, 0
  $region9: #{iic_loss.1} parent=0 // pred_fallthru
    _
  %s31 = sadd.s32 0, 0
  %p32 = scmp.lt.s32.totalorder %s31, 0
  %s33 = scalar_select %p32, %s31, 0
  %p34 = scmp.lt.s32.totalorder %s33, 0
  %s35 = scalar_select %p34, %s33, 0
  %s36 = smul.addr %s35, 8
  %s37 = scalar_lea.vmem %s0, %s36
  %s38 = sadd.s32 0, 0
  %p39 = scmp.lt.s32.totalorder %s38, 0
  %s40 = scalar_select %p39, %s38, 0
  %p41 = scmp.lt.s32.totalorder %s40, 0
  %s42 = scalar_select %p41, %s40, 0
  %s43 = smul.addr %s42, 8
  %s44 = scalar_lea.vmem %s1, %s43
  %s45 = sadd.s32 0, 0
  %p46 = scmp.lt.s32.totalorder %s45, 0
  %s47 = scalar_select %p46, %s45, 0
  %p48 = scmp.lt.s32.totalorder %s47, 0
  %s49 = scalar_select %p48, %s47, 0
  %s50 = smul.addr %s49, 8
  %s51 = scalar_lea.vmem %s0, %s50
  %s52 = sadd.s32 0, 0
  %p53 = scmp.lt.s32.totalorder %s52, 0
  %s54 = scalar_select %p53, %s52, 0
  %s55 = sadd.s32 0, 0
  %p56 = scmp.lt.s32.totalorder %s55, 0
  %s57 = scalar_select %p56, %s55, 0
  %p58 = scmp.lt.s32.totalorder %s57, 0
  %s59 = scalar_select %p58, %s57, 0
  %s60 = smul.addr %s59, 8
  %s61 = scalar_lea.vmem %s1, %s60
  %s62 = sadd.s32 0, 0
  %p63 = scmp.lt.s32.totalorder %s62, 0
  %s64 = scalar_select %p63, %s62, 0
  %p65 = scmp.eq.s32.totalorder 0, 0
  // Predicated region
  $region10: #{iic_loss.1} parent=0 // pred_check
    %p66 = pneg %p65
  $region11: #{iic_loss.1} parent=0 // pred_check_branch
    %68 = sbr.rel (%p66) target = $region13
  $region12: #{iic_loss.1} parent=0 // pred_region
    %69 = vst [vmem:[%s2] sm:$0xff] 0.0
    %70 = vst [vmem:[%s2 + $0x8] sm:$0xff] 0.0
    %71 = vst [vmem:[%s2 + $0x10] sm:$0xff] 0.0
    %72 = vst [vmem:[%s2 + $0x18] sm:$0xff] 0.0
    %73 = vst [vmem:[%s2 + $0x20] sm:$0xff] 0.0
    %74 = vst [vmem:[%s2 + $0x28] sm:$0xff] 0.0
    %75 = vst [vmem:[%s2 + $0x30] sm:$0xff] 0.0
    %76 = vst [vmem:[%s2 + $0x38] sm:$0xff] 0.0
    %77 = vst [vmem:[%s2 + $0x40] sm:$0xff] 0.0
    %78 = vst [vmem:[%s2 + $0x48] sm:$0xff] 0.0
    %79 = vst [vmem:[%s2 + $0x50] sm:$0xff] 0.0
    %80 = vst [vmem:[%s2 + $0x58] sm:$0xff] 0.0
    %81 = vst [vmem:[%s2 + $0x60] sm:$0xff] 0.0
    %82 = vst [vmem:[%s2 + $0x68] sm:$0xff] 0.0
    %83 = vst [vmem:[%s2 + $0x70] sm:$0xff] 0.0
    %84 = vst [vmem:[%s2 + $0x78] sm:$0xff] 0.0
  $region13: #{iic_loss.1} parent=0 // pred_fallthru
    _
  %s85 = sadd.s32 0, 0
  %s86 = smul.u32 %s85, 8
  %s87 = sadd.s32 %s86, 8
  %p88 = scmp.le.s32.totalorder %s87, 8
  // Predicated region
  $region14: #{iic_loss.1} parent=0 // pred_check
    %p89 = pneg %p88
  $region15: #{iic_loss.1} parent=0 // pred_check_branch
    %91 = sbr.rel (%p89) target = $region17
  $region16: #{iic_loss.1} parent=0 // pred_region
    %v92 = vld [vmem:[%s51] sm:$0xff]
    %v93 = vld [vmem:[%s61] sm:$0xff]
    %v94 = vld [vmem:[%s2] sm:$0xff]
    %v95 = vld [vmem:[%s2 + $0x8] sm:$0xff]
    %v96 = vld [vmem:[%s2 + $0x10] sm:$0xff]
    %v97 = vld [vmem:[%s2 + $0x18] sm:$0xff]
    %v98 = vld [vmem:[%s2 + $0x20] sm:$0xff]
    %v99 = vld [vmem:[%s2 + $0x28] sm:$0xff]
    %v100 = vld [vmem:[%s2 + $0x30] sm:$0xff]
    %v101 = vld [vmem:[%s2 + $0x38] sm:$0xff]
    %v102 = vld [vmem:[%s2 + $0x40] sm:$0xff]
    %v103 = vld [vmem:[%s2 + $0x48] sm:$0xff]
    %v104 = vld [vmem:[%s2 + $0x50] sm:$0xff]
    %v105 = vld [vmem:[%s2 + $0x58] sm:$0xff]
    %v106 = vld [vmem:[%s2 + $0x60] sm:$0xff]
    %v107 = vld [vmem:[%s2 + $0x68] sm:$0xff]
    %v108 = vld [vmem:[%s2 + $0x70] sm:$0xff]
    %v109 = vld [vmem:[%s2 + $0x78] sm:$0xff]
    %110 = vxpose.xlu0.b32.start [1/16] %v92, 128
    %111 = vxpose.xlu0.b32.cont [2/16] 0.0, 128
    %112 = vxpose.xlu0.b32.cont [3/16] 0.0, 128
    %113 = vxpose.xlu0.b32.cont [4/16] 0.0, 128
    %114 = vxpose.xlu0.b32.cont [5/16] 0.0, 128
    %115 = vxpose.xlu0.b32.cont [6/16] 0.0, 128
    %116 = vxpose.xlu0.b32.cont [7/16] 0.0, 128
    %117 = vxpose.xlu0.b32.cont [8/16] 0.0, 128
    %118 = vxpose.xlu0.b32.cont [9/16] 0.0, 128
    %119 = vxpose.xlu0.b32.cont [10/16] 0.0, 128
    %120 = vxpose.xlu0.b32.cont [11/16] 0.0, 128
    %121 = vxpose.xlu0.b32.cont [12/16] 0.0, 128
    %122 = vxpose.xlu0.b32.cont [13/16] 0.0, 128
    %123 = vxpose.xlu0.b32.cont [14/16] 0.0, 128
    %124 = vxpose.xlu0.b32.cont [15/16] 0.0, 128
    %125 = vxpose.xlu0.b32.end [16/16] 0.0, 128
    %v126 = vpop.trf.xlu0
    %v127 = vpop.trf.xlu0
    %v128 = vpop.trf.xlu0
    %v129 = vpop.trf.xlu0
    %v130 = vpop.trf.xlu0
    %v131 = vpop.trf.xlu0
    %v132 = vpop.trf.xlu0
    %v133 = vpop.trf.xlu0
    %v134 = vpop.trf.xlu0
    %v135 = vpop.trf.xlu0
    %v136 = vpop.trf.xlu0
    %v137 = vpop.trf.xlu0
    %v138 = vpop.trf.xlu0
    %v139 = vpop.trf.xlu0
    %v140 = vpop.trf.xlu0
    %v141 = vpop.trf.xlu0
    %vm142 = vcmask 64512
    %v144 = vsel %vm142, %v126, 0
    %v147 = vsel %vm142, %v127, 0
    %v150 = vsel %vm142, %v128, 0
    %v153 = vsel %vm142, %v129, 0
    %v156 = vsel %vm142, %v130, 0
    %v159 = vsel %vm142, %v131, 0
    %v162 = vsel %vm142, %v132, 0
    %v165 = vsel %vm142, %v133, 0
    %v168 = vsel %vm142, %v134, 0
    %v171 = vsel %vm142, %v135, 0
    %v174 = vsel %vm142, %v136, 0
    %v177 = vsel %vm142, %v137, 0
    %v180 = vsel %vm142, %v138, 0
    %v183 = vsel %vm142, %v139, 0
    %v186 = vsel %vm142, %v140, 0
    %v189 = vsel %vm142, %v141, 0
    %191 = vmatprep.subr.mxu0 0.0
    %192 = vmatpush1.msra.mxu0 0.0
    %193 = vmatprep.subr.mxu0 0.0
    %194 = vmatpush1.msra.mxu0 0.0
    %195 = vmatprep.subr.mxu0 0.0
    %196 = vmatpush1.msra.mxu0 0.0
    %197 = vmatprep.subr.mxu0 0.0
    %198 = vmatpush1.msra.mxu0 0.0
    %199 = vmatprep.subr.mxu0 0.0
    %200 = vmatpush1.msra.mxu0 0.0
    %201 = vmatprep.subr.mxu0 0.0
    %202 = vmatpush1.msra.mxu0 0.0
    %203 = vmatprep.subr.mxu0 0.0
    %204 = vmatpush1.msra.mxu0 0.0
    %205 = vmatprep.subr.mxu0 0.0
    %206 = vmatpush1.msra.mxu0 0.0
    %207 = vmatprep.subr.mxu0 0.0
    %208 = vmatpush1.msra.mxu0 0.0
    %209 = vmatprep.subr.mxu0 0.0
    %210 = vmatpush1.msra.mxu0 0.0
    %211 = vmatprep.subr.mxu0 0.0
    %212 = vmatpush1.msra.mxu0 0.0
    %213 = vmatprep.subr.mxu0 0.0
    %214 = vmatpush1.msra.mxu0 0.0
    %215 = vmatprep.subr.mxu0 0.0
    %216 = vmatpush1.msra.mxu0 0.0
    %217 = vmatprep.subr.mxu0 0.0
    %218 = vmatpush1.msra.mxu0 0.0
    %219 = vmatprep.subr.mxu0 0.0
    %220 = vmatpush1.msra.mxu0 0.0
    %221 = vmatprep.subr.mxu0 0.0
    %222 = vmatpush1.msra.mxu0 %v93
    %223 = vmatprep.subr.mxu0 0.0
    %224 = vmatpush2.msra.mxu0 0.0
    %225 = vmatprep.subr.mxu0 0.0
    %226 = vmatpush2.msra.mxu0 0.0
    %227 = vmatprep.subr.mxu0 0.0
    %228 = vmatpush2.msra.mxu0 0.0
    %229 = vmatprep.subr.mxu0 0.0
    %230 = vmatpush2.msra.mxu0 0.0
    %231 = vmatprep.subr.mxu0 0.0
    %232 = vmatpush2.msra.mxu0 0.0
    %233 = vmatprep.subr.mxu0 0.0
    %234 = vmatpush2.msra.mxu0 0.0
    %235 = vmatprep.subr.mxu0 0.0
    %236 = vmatpush2.msra.mxu0 0.0
    %237 = vmatprep.subr.mxu0 0.0
    %238 = vmatpush2.msra.mxu0 0.0
    %239 = vmatprep.subr.mxu0 0.0
    %240 = vmatpush2.msra.mxu0 0.0
    %241 = vmatprep.subr.mxu0 0.0
    %242 = vmatpush2.msra.mxu0 0.0
    %243 = vmatprep.subr.mxu0 0.0
    %244 = vmatpush2.msra.mxu0 0.0
    %245 = vmatprep.subr.mxu0 0.0
    %246 = vmatpush2.msra.mxu0 0.0
    %247 = vmatprep.subr.mxu0 0.0
    %248 = vmatpush2.msra.mxu0 0.0
    %249 = vmatprep.subr.mxu0 0.0
    %250 = vmatpush2.msra.mxu0 0.0
    %251 = vmatprep.subr.mxu0 0.0
    %252 = vmatpush2.msra.mxu0 0.0
    %253 = vmatprep.subr.mxu0 0.0
    %254 = vmatpush2.msra.mxu0 0.0
    %255 = vmatprep.mubr.f32.mxu0 0.0
    %256 = vmatmul.mubr.f32.gmra.mxu0 %v144
    %v257 = vpop.f32.mrf.mxu0
    %v258 = vadd.f32 0.0, %v257
    %v259 = vpop.f32.mrf.mxu0
    %260 = vmatprep.mubr.f32.mxu0 0.0
    %261 = vmatmul.mubr.f32.gmra.mxu0 %v147
    %v262 = vpop.f32.mrf.mxu0
    %v263 = vadd.f32 0.0, %v262
    %v264 = vpop.f32.mrf.mxu0
    %265 = vmatprep.mubr.f32.mxu0 0.0
    %266 = vmatmul.mubr.f32.gmra.mxu0 %v150
    %v267 = vpop.f32.mrf.mxu0
    %v268 = vadd.f32 0.0, %v267
    %v269 = vpop.f32.mrf.mxu0
    %270 = vmatprep.mubr.f32.mxu0 0.0
    %271 = vmatmul.mubr.f32.gmra.mxu0 %v153
    %v272 = vpop.f32.mrf.mxu0
    %v273 = vadd.f32 0.0, %v272
    %v274 = vpop.f32.mrf.mxu0
    %275 = vmatprep.mubr.f32.mxu0 0.0
    %276 = vmatmul.mubr.f32.gmra.mxu0 %v156
    %v277 = vpop.f32.mrf.mxu0
    %v278 = vadd.f32 0.0, %v277
    %v279 = vpop.f32.mrf.mxu0
    %280 = vmatprep.mubr.f32.mxu0 0.0
    %281 = vmatmul.mubr.f32.gmra.mxu0 %v159
    %v282 = vpop.f32.mrf.mxu0
    %v283 = vadd.f32 0.0, %v282
    %v284 = vpop.f32.mrf.mxu0
    %285 = vmatprep.mubr.f32.mxu0 0.0
    %286 = vmatmul.mubr.f32.gmra.mxu0 %v162
    %v287 = vpop.f32.mrf.mxu0
    %v288 = vadd.f32 0.0, %v287
    %v289 = vpop.f32.mrf.mxu0
    %290 = vmatprep.mubr.f32.mxu0 0.0
    %291 = vmatmul.mubr.f32.gmra.mxu0 %v165
    %v292 = vpop.f32.mrf.mxu0
    %v293 = vadd.f32 0.0, %v292
    %v294 = vpop.f32.mrf.mxu0
    %295 = vmatprep.mubr.f32.mxu0 0.0
    %296 = vmatmul.mubr.f32.gmra.mxu0 %v168
    %v297 = vpop.f32.mrf.mxu0
    %v298 = vadd.f32 0.0, %v297
    %v299 = vpop.f32.mrf.mxu0
    %300 = vmatprep.mubr.f32.mxu0 0.0
    %301 = vmatmul.mubr.f32.gmra.mxu0 %v171
    %v302 = vpop.f32.mrf.mxu0
    %v303 = vadd.f32 0.0, %v302
    %v304 = vpop.f32.mrf.mxu0
    %305 = vmatprep.mubr.f32.mxu0 0.0
    %306 = vmatmul.mubr.f32.gmra.mxu0 %v174
    %v307 = vpop.f32.mrf.mxu0
    %v308 = vadd.f32 0.0, %v307
    %v309 = vpop.f32.mrf.mxu0
    %310 = vmatprep.mubr.f32.mxu0 0.0
    %311 = vmatmul.mubr.f32.gmra.mxu0 %v177
    %v312 = vpop.f32.mrf.mxu0
    %v313 = vadd.f32 0.0, %v312
    %v314 = vpop.f32.mrf.mxu0
    %315 = vmatprep.mubr.f32.mxu0 0.0
    %316 = vmatmul.mubr.f32.gmra.mxu0 %v180
    %v317 = vpop.f32.mrf.mxu0
    %v318 = vadd.f32 0.0, %v317
    %v319 = vpop.f32.mrf.mxu0
    %320 = vmatprep.mubr.f32.mxu0 0.0
    %321 = vmatmul.mubr.f32.gmra.mxu0 %v183
    %v322 = vpop.f32.mrf.mxu0
    %v323 = vadd.f32 0.0, %v322
    %v324 = vpop.f32.mrf.mxu0
    %325 = vmatprep.mubr.f32.mxu0 0.0
    %326 = vmatmul.mubr.f32.gmra.mxu0 %v186
    %v327 = vpop.f32.mrf.mxu0
    %v328 = vadd.f32 0.0, %v327
    %v329 = vpop.f32.mrf.mxu0
    %330 = vmatprep.mubr.f32.mxu0 0.0
    %331 = vmatmul.mubr.f32.gmra.mxu0 %v189
    %v332 = vpop.f32.mrf.mxu0
    %v333 = vadd.f32 0.0, %v332
    %v334 = vpop.f32.mrf.mxu0
    %335 = vdwg.mxu0
    %v336 = vadd.f32 %v94, %v258
    %v337 = vadd.f32 %v95, %v263
    %v338 = vadd.f32 %v96, %v268
    %v339 = vadd.f32 %v97, %v273
    %v340 = vadd.f32 %v98, %v278
    %v341 = vadd.f32 %v99, %v283
    %v342 = vadd.f32 %v100, %v288
    %v343 = vadd.f32 %v101, %v293
    %v344 = vadd.f32 %v102, %v298
    %v345 = vadd.f32 %v103, %v303
    %v346 = vadd.f32 %v104, %v308
    %v347 = vadd.f32 %v105, %v313
    %v348 = vadd.f32 %v106, %v318
    %v349 = vadd.f32 %v107, %v323
    %v350 = vadd.f32 %v108, %v328
    %v351 = vadd.f32 %v109, %v333
    %352 = vst [vmem:[%s2] sm:$0xff] %v336
    %353 = vst [vmem:[%s2 + $0x8] sm:$0xff] %v337
    %354 = vst [vmem:[%s2 + $0x10] sm:$0xff] %v338
    %355 = vst [vmem:[%s2 + $0x18] sm:$0xff] %v339
    %356 = vst [vmem:[%s2 + $0x20] sm:$0xff] %v340
    %357 = vst [vmem:[%s2 + $0x28] sm:$0xff] %v341
    %358 = vst [vmem:[%s2 + $0x30] sm:$0xff] %v342
    %359 = vst [vmem:[%s2 + $0x38] sm:$0xff] %v343
    %360 = vst [vmem:[%s2 + $0x40] sm:$0xff] %v344
    %361 = vst [vmem:[%s2 + $0x48] sm:$0xff] %v345
    %362 = vst [vmem:[%s2 + $0x50] sm:$0xff] %v346
    %363 = vst [vmem:[%s2 + $0x58] sm:$0xff] %v347
    %364 = vst [vmem:[%s2 + $0x60] sm:$0xff] %v348
    %365 = vst [vmem:[%s2 + $0x68] sm:$0xff] %v349
    %366 = vst [vmem:[%s2 + $0x70] sm:$0xff] %v350
    %367 = vst [vmem:[%s2 + $0x78] sm:$0xff] %v351
  $region17: #{iic_loss.1} parent=0 // pred_fallthru
    _
  %p368 = scmp.gt.s32.totalorder %s87, 8
  // Predicated region
  $region18: #{iic_loss.1} parent=0 // pred_check
    %p369 = pneg %p368
  $region19: #{iic_loss.1} parent=0 // pred_check_branch
    %371 = sbr.rel (%p369) target = $region21
  $region20: #{iic_loss.1} parent=0 // pred_region
    %v372 = vlaneseq
    %v373 = vshrl.u32 %v372, 7
    %v374 = vstv %s86
    %v375 = vadd.s32 %v373, %v374
    %vm376 = vcmp.lt.s32.totalorder %v375, 8
    %v377 = vld [vmem:[%s51] sm:$0xff]
    %v378 = vsel %vm376, %v377, 0.0
    %v379 = vld [vmem:[%s61] sm:$0xff]
    %v380 = vsel %vm376, %v379, 0.0
    %v381 = vld [vmem:[%s2] sm:$0xff]
    %v382 = vld [vmem:[%s2 + $0x8] sm:$0xff]
    %v383 = vld [vmem:[%s2 + $0x10] sm:$0xff]
    %v384 = vld [vmem:[%s2 + $0x18] sm:$0xff]
    %v385 = vld [vmem:[%s2 + $0x20] sm:$0xff]
    %v386 = vld [vmem:[%s2 + $0x28] sm:$0xff]
    %v387 = vld [vmem:[%s2 + $0x30] sm:$0xff]
    %v388 = vld [vmem:[%s2 + $0x38] sm:$0xff]
    %v389 = vld [vmem:[%s2 + $0x40] sm:$0xff]
    %v390 = vld [vmem:[%s2 + $0x48] sm:$0xff]
    %v391 = vld [vmem:[%s2 + $0x50] sm:$0xff]
    %v392 = vld [vmem:[%s2 + $0x58] sm:$0xff]
    %v393 = vld [vmem:[%s2 + $0x60] sm:$0xff]
    %v394 = vld [vmem:[%s2 + $0x68] sm:$0xff]
    %v395 = vld [vmem:[%s2 + $0x70] sm:$0xff]
    %v396 = vld [vmem:[%s2 + $0x78] sm:$0xff]
    %397 = vxpose.xlu0.b32.start [1/16] %v378, 128
    %398 = vxpose.xlu0.b32.cont [2/16] 0.0, 128
    %399 = vxpose.xlu0.b32.cont [3/16] 0.0, 128
    %400 = vxpose.xlu0.b32.cont [4/16] 0.0, 128
    %401 = vxpose.xlu0.b32.cont [5/16] 0.0, 128
    %402 = vxpose.xlu0.b32.cont [6/16] 0.0, 128
    %403 = vxpose.xlu0.b32.cont [7/16] 0.0, 128
    %404 = vxpose.xlu0.b32.cont [8/16] 0.0, 128
    %405 = vxpose.xlu0.b32.cont [9/16] 0.0, 128
    %406 = vxpose.xlu0.b32.cont [10/16] 0.0, 128
    %407 = vxpose.xlu0.b32.cont [11/16] 0.0, 128
    %408 = vxpose.xlu0.b32.cont [12/16] 0.0, 128
    %409 = vxpose.xlu0.b32.cont [13/16] 0.0, 128
    %410 = vxpose.xlu0.b32.cont [14/16] 0.0, 128
    %411 = vxpose.xlu0.b32.cont [15/16] 0.0, 128
    %412 = vxpose.xlu0.b32.end [16/16] 0.0, 128
    %v413 = vpop.trf.xlu0
    %v414 = vpop.trf.xlu0
    %v415 = vpop.trf.xlu0
    %v416 = vpop.trf.xlu0
    %v417 = vpop.trf.xlu0
    %v418 = vpop.trf.xlu0
    %v419 = vpop.trf.xlu0
    %v420 = vpop.trf.xlu0
    %v421 = vpop.trf.xlu0
    %v422 = vpop.trf.xlu0
    %v423 = vpop.trf.xlu0
    %v424 = vpop.trf.xlu0
    %v425 = vpop.trf.xlu0
    %v426 = vpop.trf.xlu0
    %v427 = vpop.trf.xlu0
    %v428 = vpop.trf.xlu0
    %vm429 = vcmask 64512
    %v431 = vsel %vm429, %v413, 0
    %v434 = vsel %vm429, %v414, 0
    %v437 = vsel %vm429, %v415, 0
    %v440 = vsel %vm429, %v416, 0
    %v443 = vsel %vm429, %v417, 0
    %v446 = vsel %vm429, %v418, 0
    %v449 = vsel %vm429, %v419, 0
    %v452 = vsel %vm429, %v420, 0
    %v455 = vsel %vm429, %v421, 0
    %v458 = vsel %vm429, %v422, 0
    %v461 = vsel %vm429, %v423, 0
    %v464 = vsel %vm429, %v424, 0
    %v467 = vsel %vm429, %v425, 0
    %v470 = vsel %vm429, %v426, 0
    %v473 = vsel %vm429, %v427, 0
    %v476 = vsel %vm429, %v428, 0
    %478 = vmatprep.subr.mxu0 0.0
    %479 = vmatpush1.msra.mxu0 0.0
    %480 = vmatprep.subr.mxu0 0.0
    %481 = vmatpush1.msra.mxu0 0.0
    %482 = vmatprep.subr.mxu0 0.0
    %483 = vmatpush1.msra.mxu0 0.0
    %484 = vmatprep.subr.mxu0 0.0
    %485 = vmatpush1.msra.mxu0 0.0
    %486 = vmatprep.subr.mxu0 0.0
    %487 = vmatpush1.msra.mxu0 0.0
    %488 = vmatprep.subr.mxu0 0.0
    %489 = vmatpush1.msra.mxu0 0.0
    %490 = vmatprep.subr.mxu0 0.0
    %491 = vmatpush1.msra.mxu0 0.0
    %492 = vmatprep.subr.mxu0 0.0
    %493 = vmatpush1.msra.mxu0 0.0
    %494 = vmatprep.subr.mxu0 0.0
    %495 = vmatpush1.msra.mxu0 0.0
    %496 = vmatprep.subr.mxu0 0.0
    %497 = vmatpush1.msra.mxu0 0.0
    %498 = vmatprep.subr.mxu0 0.0
    %499 = vmatpush1.msra.mxu0 0.0
    %500 = vmatprep.subr.mxu0 0.0
    %501 = vmatpush1.msra.mxu0 0.0
    %502 = vmatprep.subr.mxu0 0.0
    %503 = vmatpush1.msra.mxu0 0.0
    %504 = vmatprep.subr.mxu0 0.0
    %505 = vmatpush1.msra.mxu0 0.0
    %506 = vmatprep.subr.mxu0 0.0
    %507 = vmatpush1.msra.mxu0 0.0
    %508 = vmatprep.subr.mxu0 0.0
    %509 = vmatpush1.msra.mxu0 %v380
    %510 = vmatprep.subr.mxu0 0.0
    %511 = vmatpush2.msra.mxu0 0.0
    %512 = vmatprep.subr.mxu0 0.0
    %513 = vmatpush2.msra.mxu0 0.0
    %514 = vmatprep.subr.mxu0 0.0
    %515 = vmatpush2.msra.mxu0 0.0
    %516 = vmatprep.subr.mxu0 0.0
    %517 = vmatpush2.msra.mxu0 0.0
    %518 = vmatprep.subr.mxu0 0.0
    %519 = vmatpush2.msra.mxu0 0.0
    %520 = vmatprep.subr.mxu0 0.0
    %521 = vmatpush2.msra.mxu0 0.0
    %522 = vmatprep.subr.mxu0 0.0
    %523 = vmatpush2.msra.mxu0 0.0
    %524 = vmatprep.subr.mxu0 0.0
    %525 = vmatpush2.msra.mxu0 0.0
    %526 = vmatprep.subr.mxu0 0.0
    %527 = vmatpush2.msra.mxu0 0.0
    %528 = vmatprep.subr.mxu0 0.0
    %529 = vmatpush2.msra.mxu0 0.0
    %530 = vmatprep.subr.mxu0 0.0
    %531 = vmatpush2.msra.mxu0 0.0
    %532 = vmatprep.subr.mxu0 0.0
    %533 = vmatpush2.msra.mxu0 0.0
    %534 = vmatprep.subr.mxu0 0.0
    %535 = vmatpush2.msra.mxu0 0.0
    %536 = vmatprep.subr.mxu0 0.0
    %537 = vmatpush2.msra.mxu0 0.0
    %538 = vmatprep.subr.mxu0 0.0
    %539 = vmatpush2.msra.mxu0 0.0
    %540 = vmatprep.subr.mxu0 0.0
    %541 = vmatpush2.msra.mxu0 0.0
    %542 = vmatprep.mubr.f32.mxu0 0.0
    %543 = vmatmul.mubr.f32.gmra.mxu0 %v431
    %v544 = vpop.f32.mrf.mxu0
    %v545 = vadd.f32 0.0, %v544
    %v546 = vpop.f32.mrf.mxu0
    %547 = vmatprep.mubr.f32.mxu0 0.0
    %548 = vmatmul.mubr.f32.gmra.mxu0 %v434
    %v549 = vpop.f32.mrf.mxu0
    %v550 = vadd.f32 0.0, %v549
    %v551 = vpop.f32.mrf.mxu0
    %552 = vmatprep.mubr.f32.mxu0 0.0
    %553 = vmatmul.mubr.f32.gmra.mxu0 %v437
    %v554 = vpop.f32.mrf.mxu0
    %v555 = vadd.f32 0.0, %v554
    %v556 = vpop.f32.mrf.mxu0
    %557 = vmatprep.mubr.f32.mxu0 0.0
    %558 = vmatmul.mubr.f32.gmra.mxu0 %v440
    %v559 = vpop.f32.mrf.mxu0
    %v560 = vadd.f32 0.0, %v559
    %v561 = vpop.f32.mrf.mxu0
    %562 = vmatprep.mubr.f32.mxu0 0.0
    %563 = vmatmul.mubr.f32.gmra.mxu0 %v443
    %v564 = vpop.f32.mrf.mxu0
    %v565 = vadd.f32 0.0, %v564
    %v566 = vpop.f32.mrf.mxu0
    %567 = vmatprep.mubr.f32.mxu0 0.0
    %568 = vmatmul.mubr.f32.gmra.mxu0 %v446
    %v569 = vpop.f32.mrf.mxu0
    %v570 = vadd.f32 0.0, %v569
    %v571 = vpop.f32.mrf.mxu0
    %572 = vmatprep.mubr.f32.mxu0 0.0
    %573 = vmatmul.mubr.f32.gmra.mxu0 %v449
    %v574 = vpop.f32.mrf.mxu0
    %v575 = vadd.f32 0.0, %v574
    %v576 = vpop.f32.mrf.mxu0
    %577 = vmatprep.mubr.f32.mxu0 0.0
    %578 = vmatmul.mubr.f32.gmra.mxu0 %v452
    %v579 = vpop.f32.mrf.mxu0
    %v580 = vadd.f32 0.0, %v579
    %v581 = vpop.f32.mrf.mxu0
    %582 = vmatprep.mubr.f32.mxu0 0.0
    %583 = vmatmul.mubr.f32.gmra.mxu0 %v455
    %v584 = vpop.f32.mrf.mxu0
    %v585 = vadd.f32 0.0, %v584
    %v586 = vpop.f32.mrf.mxu0
    %587 = vmatprep.mubr.f32.mxu0 0.0
    %588 = vmatmul.mubr.f32.gmra.mxu0 %v458
    %v589 = vpop.f32.mrf.mxu0
    %v590 = vadd.f32 0.0, %v589
    %v591 = vpop.f32.mrf.mxu0
    %592 = vmatprep.mubr.f32.mxu0 0.0
    %593 = vmatmul.mubr.f32.gmra.mxu0 %v461
    %v594 = vpop.f32.mrf.mxu0
    %v595 = vadd.f32 0.0, %v594
    %v596 = vpop.f32.mrf.mxu0
    %597 = vmatprep.mubr.f32.mxu0 0.0
    %598 = vmatmul.mubr.f32.gmra.mxu0 %v464
    %v599 = vpop.f32.mrf.mxu0
    %v600 = vadd.f32 0.0, %v599
    %v601 = vpop.f32.mrf.mxu0
    %602 = vmatprep.mubr.f32.mxu0 0.0
    %603 = vmatmul.mubr.f32.gmra.mxu0 %v467
    %v604 = vpop.f32.mrf.mxu0
    %v605 = vadd.f32 0.0, %v604
    %v606 = vpop.f32.mrf.mxu0
    %607 = vmatprep.mubr.f32.mxu0 0.0
    %608 = vmatmul.mubr.f32.gmra.mxu0 %v470
    %v609 = vpop.f32.mrf.mxu0
    %v610 = vadd.f32 0.0, %v609
    %v611 = vpop.f32.mrf.mxu0
    %612 = vmatprep.mubr.f32.mxu0 0.0
    %613 = vmatmul.mubr.f32.gmra.mxu0 %v473
    %v614 = vpop.f32.mrf.mxu0
    %v615 = vadd.f32 0.0, %v614
    %v616 = vpop.f32.mrf.mxu0
    %617 = vmatprep.mubr.f32.mxu0 0.0
    %618 = vmatmul.mubr.f32.gmra.mxu0 %v476
    %v619 = vpop.f32.mrf.mxu0
    %v620 = vadd.f32 0.0, %v619
    %v621 = vpop.f32.mrf.mxu0
    %622 = vdwg.mxu0
    %v623 = vadd.f32 %v381, %v545
    %v624 = vadd.f32 %v382, %v550
    %v625 = vadd.f32 %v383, %v555
    %v626 = vadd.f32 %v384, %v560
    %v627 = vadd.f32 %v385, %v565
    %v628 = vadd.f32 %v386, %v570
    %v629 = vadd.f32 %v387, %v575
    %v630 = vadd.f32 %v388, %v580
    %v631 = vadd.f32 %v389, %v585
    %v632 = vadd.f32 %v390, %v590
    %v633 = vadd.f32 %v391, %v595
    %v634 = vadd.f32 %v392, %v600
    %v635 = vadd.f32 %v393, %v605
    %v636 = vadd.f32 %v394, %v610
    %v637 = vadd.f32 %v395, %v615
    %v638 = vadd.f32 %v396, %v620
    %639 = vst [vmem:[%s2] sm:$0xff] %v623
    %640 = vst [vmem:[%s2 + $0x8] sm:$0xff] %v624
    %641 = vst [vmem:[%s2 + $0x10] sm:$0xff] %v625
    %642 = vst [vmem:[%s2 + $0x18] sm:$0xff] %v626
    %643 = vst [vmem:[%s2 + $0x20] sm:$0xff] %v627
    %644 = vst [vmem:[%s2 + $0x28] sm:$0xff] %v628
    %645 = vst [vmem:[%s2 + $0x30] sm:$0xff] %v629
    %646 = vst [vmem:[%s2 + $0x38] sm:$0xff] %v630
    %647 = vst [vmem:[%s2 + $0x40] sm:$0xff] %v631
    %648 = vst [vmem:[%s2 + $0x48] sm:$0xff] %v632
    %649 = vst [vmem:[%s2 + $0x50] sm:$0xff] %v633
    %650 = vst [vmem:[%s2 + $0x58] sm:$0xff] %v634
    %651 = vst [vmem:[%s2 + $0x60] sm:$0xff] %v635
    %652 = vst [vmem:[%s2 + $0x68] sm:$0xff] %v636
    %653 = vst [vmem:[%s2 + $0x70] sm:$0xff] %v637
    %654 = vst [vmem:[%s2 + $0x78] sm:$0xff] %v638
  $region21: #{iic_loss.1} parent=0 // pred_fallthru
    _
  // Predicated region
  $region22: #{iic_loss.1} parent=0 // pred_check
    _
  $region23: #{iic_loss.1} parent=0 // pred_check_branch
    %656 = sbr.rel (0) target = $region25
  $region24: #{iic_loss.1} parent=0 // pred_region
    _
  $region25: #{iic_loss.1} parent=0 // pred_fallthru
    _
  // Predicated region
  $region26: #{iic_loss.1} parent=0 // pred_check
    _
  $region27: #{iic_loss.1} parent=0 // pred_check_branch
    %658 = sbr.rel (0) target = $region29
  $region28: #{iic_loss.1} parent=0 // pred_region
    _
  $region29: #{iic_loss.1} parent=0 // pred_fallthru
    _

</llo_original>
